<compile_context>
chip_gen: v7x
topology: tpu7x:2x2x1
jax: 0.10.0
libtpu: 0.0.40
codegen_flags: <defaults>
</compile_context>

<pallas_src>
import jax
import jax.numpy as jnp
from jax import lax
from jax.experimental import pallas as pl
from jax.experimental.pallas import tpu as pltpu


def _round_up(x, m):
    return ((x + m - 1) // m) * m


def _cdiv(a, b):
    return (a + b - 1) // b


def netnormal_mu_kernel(x_ref, w_ref, b_ref, mu_ref):
    # mu = x @ W^T + b.  Contract the last dim of x with the last dim of W
    # (PyTorch nn.Linear weight layout (act_dim, in_dim)) so the MXU consumes
    # W directly — no materialized transpose.
    acc = lax.dot_general(
        x_ref[...],
        w_ref[...],
        dimension_numbers=(((1,), (1,)), ((), ())),
        preferred_element_type=jnp.float32,
        precision=lax.Precision.HIGHEST,
    )
    mu_ref[...] = (acc + b_ref[...].astype(jnp.float32)).astype(mu_ref.dtype)


def net_normal_forward(x, weight, bias, std, *, block_m=None,
                       use_bf16_inputs=False, force_pallas=None):
    """Returns (mu, sigma) — the parameters of D.Normal(mu, sigma)."""
    batch, in_dim = x.shape
    act_dim = weight.shape[0]
    out_dtype = x.dtype

    # sigma = std.expand_as(mu): batch-invariant; broadcast lazily outside the
    # kernel so the memory-bound op only pays for the mu writeback.
    sigma = jnp.broadcast_to(std.reshape(1, act_dim), (batch, act_dim)).astype(out_dtype)

    # Small-problem fallback: pallas_call / DMA-pipeline setup cost dwarfs the
    # work at tiny sizes; a fused XLA dot+add wins outright there.
    use_pallas = force_pallas if force_pallas is not None else (batch >= 1024)
    if not use_pallas:
        mu = (jnp.dot(x, weight.T, preferred_element_type=jnp.float32)
              + bias[None, :]).astype(out_dtype)
        return mu, sigma

    compute_dtype = jnp.bfloat16 if use_bf16_inputs else x.dtype
    x_in = x.astype(compute_dtype)
    w_in = weight.astype(compute_dtype)
    b_in = bias.reshape(1, act_dim)          # keep bias in its own dtype (tiny)

    itemsize = jnp.dtype(compute_dtype).itemsize
    out_itemsize = jnp.dtype(out_dtype).itemsize

    if block_m is None:
        # >= ~4 grid steps on large batches (megacore sharding + pipeline depth),
        # capped for per-step-overhead amortization and VMEM.
        block_m = _round_up(_cdiv(batch, 4), 8)
        block_m = min(block_m, 4096)
    else:
        block_m = _round_up(block_m, 8)

    # VMEM budget: double-buffered x tile + out tile per row must stay well
    # under v7x's 32 MiB scoped default (64 MiB physical).  W/bias are tiny.
    vmem_budget = 16 * 1024 * 1024
    bytes_per_row = 2 * (in_dim * itemsize + act_dim * out_itemsize)
    block_m = min(block_m, max(8, (vmem_budget // bytes_per_row) // 8 * 8))
    block_m = max(block_m, 8)

    grid = (_cdiv(batch, block_m),)

    cost = pl.CostEstimate(
        flops=2 * batch * in_dim * act_dim,
        transcendentals=0,
        bytes_accessed=(x_in.size * itemsize + w_in.size * itemsize
                        + b_in.size * jnp.dtype(bias.dtype).itemsize
                        + batch * act_dim * out_itemsize),
    )

    mu = pl.pallas_call(
        netnormal_mu_kernel,
        out_shape=jax.ShapeDtypeStruct((batch, act_dim), out_dtype),
        grid_spec=pltpu.PrefetchScalarGridSpec(
            num_scalar_prefetch=0,
            grid=grid,
            in_specs=[
                # x tile: last dim == full array dim (no K padding needed).
                pl.BlockSpec((block_m, in_dim), lambda i: (i, 0)),
                # W resident (full array, constant index_map -> DMA'd once).
                pl.BlockSpec((act_dim, in_dim), lambda i: (0, 0)),
                # bias row, resident.
                pl.BlockSpec((1, act_dim), lambda i: (0, 0)),
            ],
            # Narrow (act_dim-wide) masked stores beat 16x padded writeback.
            out_specs=pl.BlockSpec((block_m, act_dim), lambda i: (i, 0)),
        ),
        compiler_params=pltpu.CompilerParams(
            dimension_semantics=("parallel",),  # shard batch tiles across TCs
        ),
        cost_estimate=cost,
    )(x_in, w_in, b_in)

    return mu, sigma


def constrain_std(std):
    """Equivalent of NetNormal.constrain_std (clamp below at 0.001)."""
    return jnp.maximum(std, 0.001)


def init_net_normal_params(in_dim, act_dim, sigma, dtype=jnp.float32):
    """Deterministic init exactly matching NetNormal.__init__:
    weight.fill_(0.0), bias.fill_(0.0), std = ones(act_dim) * sigma."""
    weight = jnp.zeros((act_dim, in_dim), dtype=dtype)
    bias = jnp.zeros((act_dim,), dtype=dtype)
    std = jnp.ones((act_dim,), dtype=dtype) * sigma
    return weight, bias, std


if __name__ == "__main__":
    batch, in_dim, act_dim = 8, 32, 8
    sigma = 0.5

    key = jax.random.PRNGKey(0)
    kx, kw, kb, kx2 = jax.random.split(key, 4)
    x = jax.random.normal(kx, (batch, in_dim), dtype=jnp.float32)

    # 1) Module's actual init (zero weight/bias, std = sigma), Pallas path
    #    forced (a batch this small would otherwise take the XLA fallback).
    weight, bias, std = init_net_normal_params(in_dim, act_dim, sigma)
    mu, sig = net_normal_forward(x, weight, bias, std, force_pallas=True)
    mu = jax.block_until_ready(mu)
    sig = jax.block_until_ready(sig)
    mu_ref = x @ weight.T + bias[None, :]
    sig_ref = jnp.broadcast_to(std[None, :], (batch, act_dim))
    assert mu.shape == (batch, act_dim) and sig.shape == (batch, act_dim)
    assert jnp.allclose(mu, mu_ref, atol=1e-5)
    assert jnp.allclose(sig, sig_ref, atol=1e-6)

    # 2) Random weights + ragged batch (not a multiple of block_m) to exercise
    #    the matmul path and the masked edge-block writeback.
    w_r = jax.random.normal(kw, (act_dim, in_dim), dtype=jnp.float32) * 0.1
    b_r = jax.random.normal(kb, (act_dim,), dtype=jnp.float32) * 0.1
    batch2 = 13
    x2 = jax.random.normal(kx2, (batch2, in_dim), dtype=jnp.float32)
    mu2, _ = net_normal_forward(x2, w_r, b_r, std, force_pallas=True)
    mu2 = jax.block_until_ready(mu2)
    assert jnp.allclose(mu2, x2 @ w_r.T + b_r[None, :], atol=1e-5)

    # 3) Optional bf16-input path (halves HBM read traffic; looser tolerance).
    mu3, _ = net_normal_forward(x, w_r, b_r, std, force_pallas=True,
                                use_bf16_inputs=True)
    mu3 = jax.block_until_ready(mu3)
    assert jnp.allclose(mu3, x @ w_r.T + b_r[None, :], atol=3e-2)

    # 4) Heuristic small-batch fallback (fused XLA dot+add).
    mu4, _ = net_normal_forward(x, w_r, b_r, std)
    assert jnp.allclose(jax.block_until_ready(mu4),
                        x @ w_r.T + b_r[None, :], atol=1e-5)

    # TODO(synk): torch.distributions.Normal object itself (rsample/log_prob)
    # is out of scope for a Pallas kernel; (mu, sigma) fully parameterize it.
    print("KERNEL_OK")
</pallas_src>

<mosaic_0001>
module attributes {stable_mosaic.version = 11 : i64} {
  func.func @netnormal_mu_kernel(%arg0: i32, %arg1: memref<8x32xf32, #tpu.memory_space<vmem>>, %arg2: memref<8x32xf32, #tpu.memory_space<vmem>>, %arg3: memref<1x8xf32, #tpu.memory_space<vmem>>, %arg4: memref<8x8xf32, #tpu.memory_space<vmem>>) attributes {dimension_semantics = [#tpu.dimension_semantics<parallel>], iteration_bounds = array<i64: 1>, scalar_prefetch = 0 : i64, scratch_operands = 0 : i64, tpu.core_type = #tpu.core_type<tc>, window_params = [{transform_indices = @transform_0, window_bounds = array<i64: 8, 32>}, {pipeline_mode = #tpu.pipeline_mode<synchronous>, transform_indices = @transform_1, window_bounds = array<i64: 8, 32>}, {pipeline_mode = #tpu.pipeline_mode<synchronous>, transform_indices = @transform_2, window_bounds = array<i64: 1, 8>}, {transform_indices = @transform_3, window_bounds = array<i64: 8, 8>}]} {
    %c0 = arith.constant 0 : index
    %c0_0 = arith.constant 0 : index
    %0 = vector.load %arg1[%c0, %c0_0] : memref<8x32xf32, #tpu.memory_space<vmem>>, vector<8x32xf32>
    %c0_1 = arith.constant 0 : index
    %c0_2 = arith.constant 0 : index
    %1 = vector.load %arg2[%c0_1, %c0_2] : memref<8x32xf32, #tpu.memory_space<vmem>>, vector<8x32xf32>
    %cst = arith.constant dense<0.000000e+00> : vector<8x8xf32>
    %2 = tpu.matmul %0, %1, %cst {dimension_numbers = #tpu.dot_dimension_numbers<[1], [1], [0], [0], [0, 0, 1, 0], [], []>, precision = #tpu.contract_precision<fp32>} : vector<8x32xf32>, vector<8x32xf32>, vector<8x8xf32> -> vector<8x8xf32>
    %c0_3 = arith.constant 0 : index
    %c0_4 = arith.constant 0 : index
    %3 = vector.load %arg3[%c0_3, %c0_4] : memref<1x8xf32, #tpu.memory_space<vmem>>, vector<1x8xf32>
    %4 = vector.broadcast %3 : vector<1x8xf32> to vector<8x8xf32>
    %5 = arith.addf %2, %4 : vector<8x8xf32>
    %c0_5 = arith.constant 0 : index
    %c0_6 = arith.constant 0 : index
    %6 = vector.load %arg4[%c0_5, %c0_6] : memref<8x8xf32, #tpu.memory_space<vmem>>, vector<8x8xf32>
    tpu.vector_store %arg4[%c0_5, %c0_6], %5 {strides = array<i32>} : memref<8x8xf32, #tpu.memory_space<vmem>>, vector<8x8xf32>,
    return
  }
  func.func @transform_0(%arg0: i32) -> (i32, i32) {
    %c0_i32 = arith.constant 0 : i32
    %c0_i32_0 = arith.constant 0 : i32
    return %arg0, %c0_i32 : i32, i32
  }
  func.func @transform_1(%arg0: i32) -> (i32, i32) {
    %c0_i32 = arith.constant 0 : i32
    %c0_i32_0 = arith.constant 0 : i32
    %c0_i32_1 = arith.constant 0 : i32
    return %c0_i32, %c0_i32_0 : i32, i32
  }
  func.func @transform_2(%arg0: i32) -> (i32, i32) {
    %c0_i32 = arith.constant 0 : i32
    %c0_i32_0 = arith.constant 0 : i32
    %c0_i32_1 = arith.constant 0 : i32
    return %c0_i32, %c0_i32_0 : i32, i32
  }
  func.func @transform_3(%arg0: i32) -> (i32, i32) {
    %c0_i32 = arith.constant 0 : i32
    %c0_i32_0 = arith.constant 0 : i32
    return %arg0, %c0_i32 : i32, i32
  }
}

</mosaic_0001>

<llo_original>
// kernel: tpu_custom_call.1
$region0: #{tpu_custom_call.1}
  #allocation0 [shape = 'u32[]', space=smem, size = 0x4, offset = 0x4, fixed_abs, tag = 'smem constant byte address 0x4 - core index']
  #allocation1 [shape = 'u32[144,128]{1,0:T(1,128)}', space=vmem, size = 0x12000, scoped, tag = 'internal scratch']
  %s0 = inlined_call_operand.hbm [shape: f32[8,32], index: 0, kind: input, shape index: {}]
  %s1 = inlined_call_operand.hbm [shape: f32[8,32], index: 1, kind: input, shape index: {}]
  %s2 = inlined_call_operand.vmem [shape: f32[1,8], index: 2, kind: input, shape index: {}]
  %s3 = inlined_call_operand.hbm [shape: f32[8,8], index: 3, kind: output, shape index: {}]
  %s4 = sld [smem:[#allocation0]]
  $region30: #{tpu_custom_call.1} parent=0
    _
  %s6 = ssub.s32 1, %s4
  %s7 = scalar_select 0, %s6, %s4
  $region1: #{tpu_custom_call.1} parent=0
    #allocation2 [shape = 'u8[4096]{0}', space=vmem, size = 0x1000, scoped, tag = 'input window, operand 0, single buffered']
    #allocation3 [shape = 's32[1]{0}', space=sflag, size = 0x4, scoped, tag = 'scoped memory for tpu_custom_call.1']
    #allocation4 [shape = 's32[1]{0}', space=sflag, size = 0x4, scoped, tag = 'scoped memory for tpu_custom_call.1']
    #allocation5 [shape = 'u8[4096]{0}', space=vmem, size = 0x1000, scoped, tag = 'input window, operand 1, single buffered']
    #allocation6 [shape = 's32[1]{0}', space=sflag, size = 0x4, scoped, tag = 'scoped memory for tpu_custom_call.1']
    #allocation7 [shape = 'u8[4096]{0}', space=vmem, size = 0x1000, scoped, tag = 'output window, operand 0, single buffered']
    %8 = vsyncpa [#allocation3], 0
    %9 = vsyncpa [#allocation6], 0
    %10 = vsyncpa [#allocation4], 0
    // Predicated region
    $region2: #{tpu_custom_call.1} parent=1 // pred_check
      _
    $region3: #{tpu_custom_call.1} parent=1 // pred_check_branch
      %12 = sbr.rel (0) target = $region5
    $region4: #{tpu_custom_call.1} parent=1 // pred_region
      %s14 = ssub.s32 128, 128
      %15 = vsyncadd [#allocation3], %s14
      %s17 = sshll.u32 [#allocation2], 4
      %s18 = int_to_ptr.vmem [resolvable:$true] %s17
      %20 = dma.hbm_to_vmem [thread:$0]  %s0, 128, %s18, [#allocation3]
    $region5: #{tpu_custom_call.1} parent=1 // pred_fallthru
      _
    // Predicated region
    $region6: #{tpu_custom_call.1} parent=1 // pred_check
      _
    $region7: #{tpu_custom_call.1} parent=1 // pred_check_branch
      %22 = sbr.rel (0) target = $region9
    $region8: #{tpu_custom_call.1} parent=1 // pred_region
      %s24 = ssub.s32 128, 128
      %25 = vsyncadd [#allocation6], %s24
      %s27 = sshll.u32 [#allocation5], 4
      %s28 = int_to_ptr.vmem [resolvable:$true] %s27
      %30 = dma.hbm_to_vmem [thread:$0]  %s1, 128, %s28, [#allocation6]
    $region9: #{tpu_custom_call.1} parent=1 // pred_fallthru
      _
    // Predicated region
    $region10: #{tpu_custom_call.1} parent=1 // pred_check
      _
    $region11: #{tpu_custom_call.1} parent=1 // pred_check_branch
      %32 = sbr.rel (0) target = $region13
    $region12: #{tpu_custom_call.1} parent=1 // pred_region
      _
    $region13: #{tpu_custom_call.1} parent=1 // pred_fallthru
      _
    // Predicated region
    $region14: #{tpu_custom_call.1} parent=1 // pred_check
      _
    $region15: #{tpu_custom_call.1} parent=1 // pred_check_branch
      %34 = sbr.rel (0) target = $region17
    $region16: #{tpu_custom_call.1} parent=1 // pred_region
      %35 = dma.done [#allocation3], 128
    $region17: #{tpu_custom_call.1} parent=1 // pred_fallthru
      _
    // Predicated region
    $region18: #{tpu_custom_call.1} parent=1 // pred_check
      _
    $region19: #{tpu_custom_call.1} parent=1 // pred_check_branch
      %37 = sbr.rel (0) target = $region21
    $region20: #{tpu_custom_call.1} parent=1 // pred_region
      %38 = dma.done [#allocation6], 128
    $region21: #{tpu_custom_call.1} parent=1 // pred_fallthru
      _
    %v39 = vld [vmem:[#allocation2] sm:$0xff]
    %v40 = vld [vmem:[#allocation5] sm:$0xff]
    %v41 = vld [vmem:[%s2] sm:$0x1]
    %v43 = vlaneseq
    %v44 = vshrl.u32 %v43, 7
    %v45 = vsub.s32 0, %v44
    %v46 = vrot.slane %v41, %v45
    %vm48 = vcmask 261120
    %v50 = vsel %vm48, %v39, 0
    %v53 = vsel %vm48, %v40, 0
    %55 = vmatprep.subr.mxu0 0.0
    %v56 = vand.u32 %v53, 4294901760
    %57 = vmatpush1.xpose.msra.mxu0 %v56
    %58 = vmatprep.subr.mxu0 0.0
    %59 = vmatpush1.xpose.msra.mxu0 0.0
    %60 = vmatprep.subr.mxu0 0.0
    %61 = vmatpush1.xpose.msra.mxu0 0.0
    %62 = vmatprep.subr.mxu0 0.0
    %63 = vmatpush1.xpose.msra.mxu0 0.0
    %64 = vmatprep.subr.mxu0 0.0
    %65 = vmatpush1.xpose.msra.mxu0 0.0
    %66 = vmatprep.subr.mxu0 0.0
    %67 = vmatpush1.xpose.msra.mxu0 0.0
    %68 = vmatprep.subr.mxu0 0.0
    %69 = vmatpush1.xpose.msra.mxu0 0.0
    %70 = vmatprep.subr.mxu0 0.0
    %71 = vmatpush1.xpose.msra.mxu0 0.0
    %72 = vmatprep.subr.mxu0 0.0
    %73 = vmatpush1.xpose.msra.mxu0 0.0
    %74 = vmatprep.subr.mxu0 0.0
    %75 = vmatpush1.xpose.msra.mxu0 0.0
    %76 = vmatprep.subr.mxu0 0.0
    %77 = vmatpush1.xpose.msra.mxu0 0.0
    %78 = vmatprep.subr.mxu0 0.0
    %79 = vmatpush1.xpose.msra.mxu0 0.0
    %80 = vmatprep.subr.mxu0 0.0
    %81 = vmatpush1.xpose.msra.mxu0 0.0
    %82 = vmatprep.subr.mxu0 0.0
    %83 = vmatpush1.xpose.msra.mxu0 0.0
    %84 = vmatprep.subr.mxu0 0.0
    %85 = vmatpush1.xpose.msra.mxu0 0.0
    %86 = vmatprep.subr.mxu0 0.0
    %87 = vmatpush1.xpose.msra.mxu0 0.0
    %88 = vmatprep.subr.mxu0 0.0
    %89 = vmatpush1.xpose.msra.mxu0 0.0
    %90 = vmatprep.subr.mxu0 0.0
    %91 = vmatpush1.xpose.msra.mxu0 0.0
    %92 = vmatprep.subr.mxu0 0.0
    %93 = vmatpush1.xpose.msra.mxu0 0.0
    %94 = vmatprep.subr.mxu0 0.0
    %95 = vmatpush1.xpose.msra.mxu0 0.0
    %96 = vmatprep.subr.mxu0 0.0
    %97 = vmatpush1.xpose.msra.mxu0 0.0
    %98 = vmatprep.subr.mxu0 0.0
    %99 = vmatpush1.xpose.msra.mxu0 0.0
    %100 = vmatprep.subr.mxu0 0.0
    %101 = vmatpush1.xpose.msra.mxu0 0.0
    %102 = vmatprep.subr.mxu0 0.0
    %103 = vmatpush1.xpose.msra.mxu0 0.0
    %104 = vmatprep.subr.mxu0 0.0
    %105 = vmatpush1.xpose.msra.mxu0 0.0
    %106 = vmatprep.subr.mxu0 0.0
    %107 = vmatpush1.xpose.msra.mxu0 0.0
    %108 = vmatprep.subr.mxu0 0.0
    %109 = vmatpush1.xpose.msra.mxu0 0.0
    %110 = vmatprep.subr.mxu0 0.0
    %111 = vmatpush1.xpose.msra.mxu0 0.0
    %112 = vmatprep.subr.mxu0 0.0
    %113 = vmatpush1.xpose.msra.mxu0 0.0
    %114 = vmatprep.subr.mxu0 0.0
    %115 = vmatpush1.xpose.msra.mxu0 0.0
    %116 = vmatprep.subr.mxu0 0.0
    %117 = vmatpush1.xpose.msra.mxu0 0.0
    %118 = vmatprep.subr.mxu0 0.0
    %119 = vmatpush1.xpose.msra.mxu0 0.0
    %120 = vmatprep.mubr.f32.mxu0 0.0
    %v121 = vand.u32 %v50, 4294901760
    %v122 = vsub.f32 %v50, %v121
    %v123 = vand.u32 %v122, 4294901760
    %v124 = vsub.f32 %v122, %v123
    %v125 = vand.u32 %v124, 4294901760
    %126 = vmatmul.mubr.f32.gmra.mrb[0].mxu0 %v125
    %v127 = vpop.f32.mrb[0].mxu0
    %v128 = vadd.f32 %v46, %v127
    %v129 = vpop.f32.mrb[0].mxu0
    %130 = vdwg.mxu0
    %131 = vmatprep.subr.mxu0 0.0
    %v132 = vand.u32 %v53, 4294901760
    %v133 = vsub.f32 %v53, %v132
    %v134 = vand.u32 %v133, 4294901760
    %v135 = vsub.f32 %v133, %v134
    %v136 = vand.u32 %v135, 4294901760
    %137 = vmatpush1.xpose.msra.mxu0 %v136
    %138 = vmatprep.subr.mxu0 0.0
    %139 = vmatpush1.xpose.msra.mxu0 0.0
    %140 = vmatprep.subr.mxu0 0.0
    %141 = vmatpush1.xpose.msra.mxu0 0.0
    %142 = vmatprep.subr.mxu0 0.0
    %143 = vmatpush1.xpose.msra.mxu0 0.0
    %144 = vmatprep.subr.mxu0 0.0
    %145 = vmatpush1.xpose.msra.mxu0 0.0
    %146 = vmatprep.subr.mxu0 0.0
    %147 = vmatpush1.xpose.msra.mxu0 0.0
    %148 = vmatprep.subr.mxu0 0.0
    %149 = vmatpush1.xpose.msra.mxu0 0.0
    %150 = vmatprep.subr.mxu0 0.0
    %151 = vmatpush1.xpose.msra.mxu0 0.0
    %152 = vmatprep.subr.mxu0 0.0
    %153 = vmatpush1.xpose.msra.mxu0 0.0
    %154 = vmatprep.subr.mxu0 0.0
    %155 = vmatpush1.xpose.msra.mxu0 0.0
    %156 = vmatprep.subr.mxu0 0.0
    %157 = vmatpush1.xpose.msra.mxu0 0.0
    %158 = vmatprep.subr.mxu0 0.0
    %159 = vmatpush1.xpose.msra.mxu0 0.0
    %160 = vmatprep.subr.mxu0 0.0
    %161 = vmatpush1.xpose.msra.mxu0 0.0
    %162 = vmatprep.subr.mxu0 0.0
    %163 = vmatpush1.xpose.msra.mxu0 0.0
    %164 = vmatprep.subr.mxu0 0.0
    %165 = vmatpush1.xpose.msra.mxu0 0.0
    %166 = vmatprep.subr.mxu0 0.0
    %167 = vmatpush1.xpose.msra.mxu0 0.0
    %168 = vmatprep.subr.mxu0 0.0
    %169 = vmatpush1.xpose.msra.mxu0 0.0
    %170 = vmatprep.subr.mxu0 0.0
    %171 = vmatpush1.xpose.msra.mxu0 0.0
    %172 = vmatprep.subr.mxu0 0.0
    %173 = vmatpush1.xpose.msra.mxu0 0.0
    %174 = vmatprep.subr.mxu0 0.0
    %175 = vmatpush1.xpose.msra.mxu0 0.0
    %176 = vmatprep.subr.mxu0 0.0
    %177 = vmatpush1.xpose.msra.mxu0 0.0
    %178 = vmatprep.subr.mxu0 0.0
    %179 = vmatpush1.xpose.msra.mxu0 0.0
    %180 = vmatprep.subr.mxu0 0.0
    %181 = vmatpush1.xpose.msra.mxu0 0.0
    %182 = vmatprep.subr.mxu0 0.0
    %183 = vmatpush1.xpose.msra.mxu0 0.0
    %184 = vmatprep.subr.mxu0 0.0
    %185 = vmatpush1.xpose.msra.mxu0 0.0
    %186 = vmatprep.subr.mxu0 0.0
    %187 = vmatpush1.xpose.msra.mxu0 0.0
    %188 = vmatprep.subr.mxu0 0.0
    %189 = vmatpush1.xpose.msra.mxu0 0.0
    %190 = vmatprep.subr.mxu0 0.0
    %191 = vmatpush1.xpose.msra.mxu0 0.0
    %192 = vmatprep.subr.mxu0 0.0
    %193 = vmatpush1.xpose.msra.mxu0 0.0
    %194 = vmatprep.subr.mxu0 0.0
    %195 = vmatpush1.xpose.msra.mxu0 0.0
    %196 = vmatprep.subr.mxu0 0.0
    %197 = vmatpush1.xpose.msra.mxu0 0.0
    %198 = vmatprep.subr.mxu0 0.0
    %199 = vmatpush1.xpose.msra.mxu0 0.0
    %200 = vmatprep.mubr.f32.mxu0 0.0
    %v201 = vand.u32 %v50, 4294901760
    %202 = vmatmul.mubr.f32.gmra.mrb[0].mxu0 %v201
    %v203 = vpop.f32.mrb[0].mxu0
    %v204 = vadd.f32 %v128, %v203
    %v205 = vpop.f32.mrb[0].mxu0
    %206 = vdwg.mxu0
    %207 = vmatprep.subr.mxu0 0.0
    %v208 = vand.u32 %v53, 4294901760
    %v209 = vsub.f32 %v53, %v208
    %210 = vmatpush1.xpose.msra.mxu0 %v209
    %211 = vmatprep.subr.mxu0 0.0
    %212 = vmatpush1.xpose.msra.mxu0 0.0
    %213 = vmatprep.subr.mxu0 0.0
    %214 = vmatpush1.xpose.msra.mxu0 0.0
    %215 = vmatprep.subr.mxu0 0.0
    %216 = vmatpush1.xpose.msra.mxu0 0.0
    %217 = vmatprep.subr.mxu0 0.0
    %218 = vmatpush1.xpose.msra.mxu0 0.0
    %219 = vmatprep.subr.mxu0 0.0
    %220 = vmatpush1.xpose.msra.mxu0 0.0
    %221 = vmatprep.subr.mxu0 0.0
    %222 = vmatpush1.xpose.msra.mxu0 0.0
    %223 = vmatprep.subr.mxu0 0.0
    %224 = vmatpush1.xpose.msra.mxu0 0.0
    %225 = vmatprep.subr.mxu0 0.0
    %226 = vmatpush1.xpose.msra.mxu0 0.0
    %227 = vmatprep.subr.mxu0 0.0
    %228 = vmatpush1.xpose.msra.mxu0 0.0
    %229 = vmatprep.subr.mxu0 0.0
    %230 = vmatpush1.xpose.msra.mxu0 0.0
    %231 = vmatprep.subr.mxu0 0.0
    %232 = vmatpush1.xpose.msra.mxu0 0.0
    %233 = vmatprep.subr.mxu0 0.0
    %234 = vmatpush1.xpose.msra.mxu0 0.0
    %235 = vmatprep.subr.mxu0 0.0
    %236 = vmatpush1.xpose.msra.mxu0 0.0
    %237 = vmatprep.subr.mxu0 0.0
    %238 = vmatpush1.xpose.msra.mxu0 0.0
    %239 = vmatprep.subr.mxu0 0.0
    %240 = vmatpush1.xpose.msra.mxu0 0.0
    %241 = vmatprep.subr.mxu0 0.0
    %242 = vmatpush1.xpose.msra.mxu0 0.0
    %243 = vmatprep.subr.mxu0 0.0
    %244 = vmatpush1.xpose.msra.mxu0 0.0
    %245 = vmatprep.subr.mxu0 0.0
    %246 = vmatpush1.xpose.msra.mxu0 0.0
    %247 = vmatprep.subr.mxu0 0.0
    %248 = vmatpush1.xpose.msra.mxu0 0.0
    %249 = vmatprep.subr.mxu0 0.0
    %250 = vmatpush1.xpose.msra.mxu0 0.0
    %251 = vmatprep.subr.mxu0 0.0
    %252 = vmatpush1.xpose.msra.mxu0 0.0
    %253 = vmatprep.subr.mxu0 0.0
    %254 = vmatpush1.xpose.msra.mxu0 0.0
    %255 = vmatprep.subr.mxu0 0.0
    %256 = vmatpush1.xpose.msra.mxu0 0.0
    %257 = vmatprep.subr.mxu0 0.0
    %258 = vmatpush1.xpose.msra.mxu0 0.0
    %259 = vmatprep.subr.mxu0 0.0
    %260 = vmatpush1.xpose.msra.mxu0 0.0
    %261 = vmatprep.subr.mxu0 0.0
    %262 = vmatpush1.xpose.msra.mxu0 0.0
    %263 = vmatprep.subr.mxu0 0.0
    %264 = vmatpush1.xpose.msra.mxu0 0.0
    %265 = vmatprep.subr.mxu0 0.0
    %266 = vmatpush1.xpose.msra.mxu0 0.0
    %267 = vmatprep.subr.mxu0 0.0
    %268 = vmatpush1.xpose.msra.mxu0 0.0
    %269 = vmatprep.subr.mxu0 0.0
    %270 = vmatpush1.xpose.msra.mxu0 0.0
    %271 = vmatprep.subr.mxu0 0.0
    %272 = vmatpush1.xpose.msra.mxu0 0.0
    %273 = vmatprep.mubr.f32.mxu0 0.0
    %v274 = vand.u32 %v50, 4294901760
    %v275 = vsub.f32 %v50, %v274
    %276 = vmatmul.mubr.f32.gmra.mrb[0].mxu0 %v275
    %v277 = vpop.f32.mrb[0].mxu0
    %v278 = vadd.f32 %v204, %v277
    %v279 = vpop.f32.mrb[0].mxu0
    %280 = vdwg.mxu0
    %281 = vmatprep.subr.mxu0 0.0
    %v282 = vand.u32 %v53, 4294901760
    %283 = vmatpush1.xpose.msra.mxu0 %v282
    %284 = vmatprep.subr.mxu0 0.0
    %285 = vmatpush1.xpose.msra.mxu0 0.0
    %286 = vmatprep.subr.mxu0 0.0
    %287 = vmatpush1.xpose.msra.mxu0 0.0
    %288 = vmatprep.subr.mxu0 0.0
    %289 = vmatpush1.xpose.msra.mxu0 0.0
    %290 = vmatprep.subr.mxu0 0.0
    %291 = vmatpush1.xpose.msra.mxu0 0.0
    %292 = vmatprep.subr.mxu0 0.0
    %293 = vmatpush1.xpose.msra.mxu0 0.0
    %294 = vmatprep.subr.mxu0 0.0
    %295 = vmatpush1.xpose.msra.mxu0 0.0
    %296 = vmatprep.subr.mxu0 0.0
    %297 = vmatpush1.xpose.msra.mxu0 0.0
    %298 = vmatprep.subr.mxu0 0.0
    %299 = vmatpush1.xpose.msra.mxu0 0.0
    %300 = vmatprep.subr.mxu0 0.0
    %301 = vmatpush1.xpose.msra.mxu0 0.0
    %302 = vmatprep.subr.mxu0 0.0
    %303 = vmatpush1.xpose.msra.mxu0 0.0
    %304 = vmatprep.subr.mxu0 0.0
    %305 = vmatpush1.xpose.msra.mxu0 0.0
    %306 = vmatprep.subr.mxu0 0.0
    %307 = vmatpush1.xpose.msra.mxu0 0.0
    %308 = vmatprep.subr.mxu0 0.0
    %309 = vmatpush1.xpose.msra.mxu0 0.0
    %310 = vmatprep.subr.mxu0 0.0
    %311 = vmatpush1.xpose.msra.mxu0 0.0
    %312 = vmatprep.subr.mxu0 0.0
    %313 = vmatpush1.xpose.msra.mxu0 0.0
    %314 = vmatprep.subr.mxu0 0.0
    %315 = vmatpush1.xpose.msra.mxu0 0.0
    %316 = vmatprep.subr.mxu0 0.0
    %317 = vmatpush1.xpose.msra.mxu0 0.0
    %318 = vmatprep.subr.mxu0 0.0
    %319 = vmatpush1.xpose.msra.mxu0 0.0
    %320 = vmatprep.subr.mxu0 0.0
    %321 = vmatpush1.xpose.msra.mxu0 0.0
    %322 = vmatprep.subr.mxu0 0.0
    %323 = vmatpush1.xpose.msra.mxu0 0.0
    %324 = vmatprep.subr.mxu0 0.0
    %325 = vmatpush1.xpose.msra.mxu0 0.0
    %326 = vmatprep.subr.mxu0 0.0
    %327 = vmatpush1.xpose.msra.mxu0 0.0
    %328 = vmatprep.subr.mxu0 0.0
    %329 = vmatpush1.xpose.msra.mxu0 0.0
    %330 = vmatprep.subr.mxu0 0.0
    %331 = vmatpush1.xpose.msra.mxu0 0.0
    %332 = vmatprep.subr.mxu0 0.0
    %333 = vmatpush1.xpose.msra.mxu0 0.0
    %334 = vmatprep.subr.mxu0 0.0
    %335 = vmatpush1.xpose.msra.mxu0 0.0
    %336 = vmatprep.subr.mxu0 0.0
    %337 = vmatpush1.xpose.msra.mxu0 0.0
    %338 = vmatprep.subr.mxu0 0.0
    %339 = vmatpush1.xpose.msra.mxu0 0.0
    %340 = vmatprep.subr.mxu0 0.0
    %341 = vmatpush1.xpose.msra.mxu0 0.0
    %342 = vmatprep.subr.mxu0 0.0
    %343 = vmatpush1.xpose.msra.mxu0 0.0
    %344 = vmatprep.subr.mxu0 0.0
    %345 = vmatpush1.xpose.msra.mxu0 0.0
    %346 = vmatprep.mubr.f32.mxu0 0.0
    %v347 = vand.u32 %v50, 4294901760
    %v348 = vsub.f32 %v50, %v347
    %v349 = vand.u32 %v348, 4294901760
    %350 = vmatmul.mubr.f32.gmra.mrb[0].mxu0 %v349
    %v351 = vpop.f32.mrb[0].mxu0
    %v352 = vadd.f32 %v278, %v351
    %v353 = vpop.f32.mrb[0].mxu0
    %354 = vdwg.mxu0
    %355 = vmatprep.subr.mxu0 0.0
    %v356 = vand.u32 %v53, 4294901760
    %v357 = vsub.f32 %v53, %v356
    %v358 = vand.u32 %v357, 4294901760
    %359 = vmatpush1.xpose.msra.mxu0 %v358
    %360 = vmatprep.subr.mxu0 0.0
    %361 = vmatpush1.xpose.msra.mxu0 0.0
    %362 = vmatprep.subr.mxu0 0.0
    %363 = vmatpush1.xpose.msra.mxu0 0.0
    %364 = vmatprep.subr.mxu0 0.0
    %365 = vmatpush1.xpose.msra.mxu0 0.0
    %366 = vmatprep.subr.mxu0 0.0
    %367 = vmatpush1.xpose.msra.mxu0 0.0
    %368 = vmatprep.subr.mxu0 0.0
    %369 = vmatpush1.xpose.msra.mxu0 0.0
    %370 = vmatprep.subr.mxu0 0.0
    %371 = vmatpush1.xpose.msra.mxu0 0.0
    %372 = vmatprep.subr.mxu0 0.0
    %373 = vmatpush1.xpose.msra.mxu0 0.0
    %374 = vmatprep.subr.mxu0 0.0
    %375 = vmatpush1.xpose.msra.mxu0 0.0
    %376 = vmatprep.subr.mxu0 0.0
    %377 = vmatpush1.xpose.msra.mxu0 0.0
    %378 = vmatprep.subr.mxu0 0.0
    %379 = vmatpush1.xpose.msra.mxu0 0.0
    %380 = vmatprep.subr.mxu0 0.0
    %381 = vmatpush1.xpose.msra.mxu0 0.0
    %382 = vmatprep.subr.mxu0 0.0
    %383 = vmatpush1.xpose.msra.mxu0 0.0
    %384 = vmatprep.subr.mxu0 0.0
    %385 = vmatpush1.xpose.msra.mxu0 0.0
    %386 = vmatprep.subr.mxu0 0.0
    %387 = vmatpush1.xpose.msra.mxu0 0.0
    %388 = vmatprep.subr.mxu0 0.0
    %389 = vmatpush1.xpose.msra.mxu0 0.0
    %390 = vmatprep.subr.mxu0 0.0
    %391 = vmatpush1.xpose.msra.mxu0 0.0
    %392 = vmatprep.subr.mxu0 0.0
    %393 = vmatpush1.xpose.msra.mxu0 0.0
    %394 = vmatprep.subr.mxu0 0.0
    %395 = vmatpush1.xpose.msra.mxu0 0.0
    %396 = vmatprep.subr.mxu0 0.0
    %397 = vmatpush1.xpose.msra.mxu0 0.0
    %398 = vmatprep.subr.mxu0 0.0
    %399 = vmatpush1.xpose.msra.mxu0 0.0
    %400 = vmatprep.subr.mxu0 0.0
    %401 = vmatpush1.xpose.msra.mxu0 0.0
    %402 = vmatprep.subr.mxu0 0.0
    %403 = vmatpush1.xpose.msra.mxu0 0.0
    %404 = vmatprep.subr.mxu0 0.0
    %405 = vmatpush1.xpose.msra.mxu0 0.0
    %406 = vmatprep.subr.mxu0 0.0
    %407 = vmatpush1.xpose.msra.mxu0 0.0
    %408 = vmatprep.subr.mxu0 0.0
    %409 = vmatpush1.xpose.msra.mxu0 0.0
    %410 = vmatprep.subr.mxu0 0.0
    %411 = vmatpush1.xpose.msra.mxu0 0.0
    %412 = vmatprep.subr.mxu0 0.0
    %413 = vmatpush1.xpose.msra.mxu0 0.0
    %414 = vmatprep.subr.mxu0 0.0
    %415 = vmatpush1.xpose.msra.mxu0 0.0
    %416 = vmatprep.subr.mxu0 0.0
    %417 = vmatpush1.xpose.msra.mxu0 0.0
    %418 = vmatprep.subr.mxu0 0.0
    %419 = vmatpush1.xpose.msra.mxu0 0.0
    %420 = vmatprep.subr.mxu0 0.0
    %421 = vmatpush1.xpose.msra.mxu0 0.0
    %422 = vmatprep.mubr.f32.mxu0 0.0
    %v423 = vand.u32 %v50, 4294901760
    %424 = vmatmul.mubr.f32.gmra.mrb[0].mxu0 %v423
    %v425 = vpop.f32.mrb[0].mxu0
    %v426 = vadd.f32 %v352, %v425
    %v427 = vpop.f32.mrb[0].mxu0
    %428 = vdwg.mxu0
    %429 = vmatprep.subr.mxu0 0.0
    %v430 = vand.u32 %v53, 4294901760
    %431 = vmatpush1.xpose.msra.mxu0 %v430
    %432 = vmatprep.subr.mxu0 0.0
    %433 = vmatpush1.xpose.msra.mxu0 0.0
    %434 = vmatprep.subr.mxu0 0.0
    %435 = vmatpush1.xpose.msra.mxu0 0.0
    %436 = vmatprep.subr.mxu0 0.0
    %437 = vmatpush1.xpose.msra.mxu0 0.0
    %438 = vmatprep.subr.mxu0 0.0
    %439 = vmatpush1.xpose.msra.mxu0 0.0
    %440 = vmatprep.subr.mxu0 0.0
    %441 = vmatpush1.xpose.msra.mxu0 0.0
    %442 = vmatprep.subr.mxu0 0.0
    %443 = vmatpush1.xpose.msra.mxu0 0.0
    %444 = vmatprep.subr.mxu0 0.0
    %445 = vmatpush1.xpose.msra.mxu0 0.0
    %446 = vmatprep.subr.mxu0 0.0
    %447 = vmatpush1.xpose.msra.mxu0 0.0
    %448 = vmatprep.subr.mxu0 0.0
    %449 = vmatpush1.xpose.msra.mxu0 0.0
    %450 = vmatprep.subr.mxu0 0.0
    %451 = vmatpush1.xpose.msra.mxu0 0.0
    %452 = vmatprep.subr.mxu0 0.0
    %453 = vmatpush1.xpose.msra.mxu0 0.0
    %454 = vmatprep.subr.mxu0 0.0
    %455 = vmatpush1.xpose.msra.mxu0 0.0
    %456 = vmatprep.subr.mxu0 0.0
    %457 = vmatpush1.xpose.msra.mxu0 0.0
    %458 = vmatprep.subr.mxu0 0.0
    %459 = vmatpush1.xpose.msra.mxu0 0.0
    %460 = vmatprep.subr.mxu0 0.0
    %461 = vmatpush1.xpose.msra.mxu0 0.0
    %462 = vmatprep.subr.mxu0 0.0
    %463 = vmatpush1.xpose.msra.mxu0 0.0
    %464 = vmatprep.subr.mxu0 0.0
    %465 = vmatpush1.xpose.msra.mxu0 0.0
    %466 = vmatprep.subr.mxu0 0.0
    %467 = vmatpush1.xpose.msra.mxu0 0.0
    %468 = vmatprep.subr.mxu0 0.0
    %469 = vmatpush1.xpose.msra.mxu0 0.0
    %470 = vmatprep.subr.mxu0 0.0
    %471 = vmatpush1.xpose.msra.mxu0 0.0
    %472 = vmatprep.subr.mxu0 0.0
    %473 = vmatpush1.xpose.msra.mxu0 0.0
    %474 = vmatprep.subr.mxu0 0.0
    %475 = vmatpush1.xpose.msra.mxu0 0.0
    %476 = vmatprep.subr.mxu0 0.0
    %477 = vmatpush1.xpose.msra.mxu0 0.0
    %478 = vmatprep.subr.mxu0 0.0
    %479 = vmatpush1.xpose.msra.mxu0 0.0
    %480 = vmatprep.subr.mxu0 0.0
    %481 = vmatpush1.xpose.msra.mxu0 0.0
    %482 = vmatprep.subr.mxu0 0.0
    %483 = vmatpush1.xpose.msra.mxu0 0.0
    %484 = vmatprep.subr.mxu0 0.0
    %485 = vmatpush1.xpose.msra.mxu0 0.0
    %486 = vmatprep.subr.mxu0 0.0
    %487 = vmatpush1.xpose.msra.mxu0 0.0
    %488 = vmatprep.subr.mxu0 0.0
    %489 = vmatpush1.xpose.msra.mxu0 0.0
    %490 = vmatprep.subr.mxu0 0.0
    %491 = vmatpush1.xpose.msra.mxu0 0.0
    %492 = vmatprep.subr.mxu0 0.0
    %493 = vmatpush1.xpose.msra.mxu0 0.0
    %494 = vmatprep.mubr.f32.mxu0 0.0
    %v495 = vand.u32 %v50, 4294901760
    %496 = vmatmul.mubr.f32.gmra.mrb[0].mxu0 %v495
    %v497 = vpop.f32.mrb[0].mxu0
    %v498 = vadd.f32 %v426, %v497
    %v499 = vpop.f32.mrb[0].mxu0
    %500 = vdwg.mxu0
    %vm501 = vcmask 64512
    %502 = vst.msk [vmem:[#allocation7] sm:$0xff] %vm501, %v498
    // Predicated region
    $region22: #{tpu_custom_call.1} parent=1 // pred_check
      _
    $region23: #{tpu_custom_call.1} parent=1 // pred_check_branch
      %504 = sbr.rel (0) target = $region25
    $region24: #{tpu_custom_call.1} parent=1 // pred_region
      %s506 = ssub.s32 128, 128
      %507 = vsyncadd [#allocation4], %s506
      %s509 = sshll.u32 [#allocation7], 4
      %s510 = int_to_ptr.vmem [resolvable:$true] %s509
      %512 = dma.vmem_to_hbm [thread:$0]  %s510, 128, %s3, [#allocation4]
    $region25: #{tpu_custom_call.1} parent=1 // pred_fallthru
      _
    // Predicated region
    $region26: #{tpu_custom_call.1} parent=1 // pred_check
      _
    $region27: #{tpu_custom_call.1} parent=1 // pred_check_branch
      %514 = sbr.rel (0) target = $region29
    $region28: #{tpu_custom_call.1} parent=1 // pred_region
      %515 = dma.done [#allocation4], 128
    $region29: #{tpu_custom_call.1} parent=1 // pred_fallthru
      _
    %516 = vsyncpa [#allocation3], 1
    %517 = vsyncpa [#allocation6], 1
    %518 = vsyncpa [#allocation4], 1

</llo_original>
